<compile_context>
chip_gen: v7x
topology: tpu7x:2x2x1
jax: 0.10.0
libtpu: 0.0.40
codegen_flags: <defaults>
</compile_context>

<pallas_src>
import math

import jax
import jax.numpy as jnp
from jax.experimental import pallas as pl
from jax.experimental.pallas import tpu as pltpu

_HALF_LOG_2PI = 0.5 * math.log(2.0 * math.pi)
_LANE = 128


def _round_up(x, m):
    return ((x + m - 1) // m) * m


# ----------------------------------------------------------------------------
# Kernel
# ----------------------------------------------------------------------------
def _actor_kernel(x_ref, w1_ref, b1_ref, w2_ref, b2_ref, w3_ref, b3_ref,
                  logstd_ref, std_ref, mask_ref, eps_ref, out_ref):
    x = x_ref[...]

    # fc1 -> relu
    h1 = jnp.maximum(
        jnp.dot(x, w1_ref[...], preferred_element_type=jnp.float32) + b1_ref[...],
        0.0)
    # fc2 -> relu
    h2 = jnp.maximum(
        jnp.dot(h1, w2_ref[...], preferred_element_type=jnp.float32) + b2_ref[...],
        0.0)
    # policy head (zero-padded columns -> padded lanes of `policy` are exactly 0)
    policy = jnp.dot(h2, w3_ref[...], preferred_element_type=jnp.float32) + b3_ref[...]

    log_std = logstd_ref[...]          # (1, Op)
    std = std_ref[...]                 # (1, Op)  -- exp(logstd), hoisted out of kernel
    eps = eps_ref[...]                 # (TILE_B, Op)
    valid = mask_ref[...] != 0.0       # (1, Op)  -- True for real output lanes

    # rsample: u = mean + std * eps ; a = tanh(u)
    u = policy + std * eps
    a = jnp.tanh(u)

    # Normal(policy, std).log_prob(u) with u = policy + std*eps
    #   == -0.5*eps^2 - log_std - 0.5*log(2*pi)       (exact, no divide)
    u_log_prob = -0.5 * (eps * eps) - log_std - _HALF_LOG_2PI
    a_log_prob = u_log_prob - jnp.log(1.0 - a * a + 0.001)
    a_log_prob = jnp.where(valid, a_log_prob, 0.0)          # drop padding lanes
    alogp_sum = jnp.sum(a_log_prob, axis=-1, keepdims=True)  # (TILE_B, 1)

    # Pack both results into one lane-dense slab:
    #   valid lanes   -> action
    #   padding lanes -> summed log-prob (broadcast)
    out_ref[...] = jnp.where(valid, a, alogp_sum)


# ----------------------------------------------------------------------------
# Parameters
# ----------------------------------------------------------------------------
def init_params(key, n_inputs, n_outputs, hidden_size):
    """Logical (unpadded) parameters; weights stored as [in_features, out_features]."""
    k1, k2, k3, k4, k5, k6 = jax.random.split(key, 6)
    scale = 0.1
    return {
        "w1": scale * jax.random.normal(k1, (n_inputs, hidden_size), jnp.float32),
        "b1": scale * jax.random.normal(k2, (1, hidden_size), jnp.float32),
        "w2": scale * jax.random.normal(k3, (hidden_size, hidden_size), jnp.float32),
        "b2": scale * jax.random.normal(k4, (1, hidden_size), jnp.float32),
        "w3": scale * jax.random.normal(k5, (hidden_size, n_outputs), jnp.float32),
        "b3": scale * jax.random.normal(k6, (1, n_outputs), jnp.float32),
        "logstd": jnp.zeros((1, n_outputs), jnp.float32),   # nn.Parameter(torch.zeros)
    }


def pad_params(params, n_inputs, n_outputs, hidden_size):
    """Zero-pad feature dims to 128 lanes so every matmul/store is lane-dense.

    Op reserves at least one spare lane beyond n_outputs so the summed
    log-prob can be packed into the output slab next to the action.
    """
    hp = _round_up(hidden_size, _LANE)
    op = _round_up(n_outputs + 1, _LANE)

    def pad2(a, rows, cols):
        return jnp.pad(a, ((0, rows - a.shape[0]), (0, cols - a.shape[1])))

    logstd_p = pad2(params["logstd"], 1, op)
    # TODO(synk): for large-batch rollouts on v6e/v7x, store w1/w2/w3 (and x) in
    # bfloat16 (keep f32 accumulation + f32 elementwise math) to halve input DMA.
    return {
        "w1": pad2(params["w1"], n_inputs, hp),
        "b1": pad2(params["b1"], 1, hp),
        "w2": pad2(params["w2"], hp, hp),
        "b2": pad2(params["b2"], 1, hp),
        "w3": pad2(params["w3"], hp, op),
        "b3": pad2(params["b3"], 1, op),
        "logstd": logstd_p,
        "std": jnp.exp(logstd_p),                                   # hoisted exp
        "mask": (jnp.arange(op) < n_outputs).astype(jnp.float32)[None, :],
    }


# ----------------------------------------------------------------------------
# Wrapper
# ----------------------------------------------------------------------------
def mujoco_actor_forward(x, padded, eps, n_outputs, tile_b=512):
    """x: (B, n_inputs) f32.  eps: (B, Op) f32 iid N(0,1) noise (only the first
    n_outputs lanes are consumed).  padded: dict from pad_params."""
    B, n_in = x.shape
    hp = padded["w1"].shape[1]
    op = padded["w3"].shape[1]
    assert eps.shape == (B, op), f"eps must be lane-padded to (B, {op})"

    # Batch tile: <= tile_b rows, multiple of 8 (sublane), pad batch if needed.
    tile = min(tile_b, _round_up(B, 8))
    bp = _round_up(B, tile)
    if bp != B:
        x = jnp.pad(x, ((0, bp - B), (0, 0)))
        eps = jnp.pad(eps, ((0, bp - B), (0, 0)))

    def row_spec(shape):       # tiled over batch
        return pl.BlockSpec(shape, lambda i: (i, 0))

    def fixed_spec(shape):     # weights/biases stay VMEM-resident across tiles
        return pl.BlockSpec(shape, lambda i: (0, 0))

    slab = pl.pallas_call(
        _actor_kernel,
        out_shape=jax.ShapeDtypeStruct((bp, op), jnp.float32),
        grid_spec=pltpu.PrefetchScalarGridSpec(
            num_scalar_prefetch=0,
            grid=(bp // tile,),
            in_specs=[
                row_spec((tile, n_in)),     # x
                fixed_spec((n_in, hp)),     # w1
                fixed_spec((1, hp)),        # b1
                fixed_spec((hp, hp)),       # w2
                fixed_spec((1, hp)),        # b2
                fixed_spec((hp, op)),       # w3
                fixed_spec((1, op)),        # b3
                fixed_spec((1, op)),        # logstd
                fixed_spec((1, op)),        # std
                fixed_spec((1, op)),        # mask
                row_spec((tile, op)),       # eps
            ],
            out_specs=row_spec((tile, op)),
        ),
        compiler_params=pltpu.CompilerParams(
            dimension_semantics=("parallel",),   # v7x: shard batch tiles over 2 TCs
        ),
    )(x, padded["w1"], padded["b1"], padded["w2"], padded["b2"],
      padded["w3"], padded["b3"], padded["logstd"], padded["std"],
      padded["mask"], eps)

    a = slab[:B, :n_outputs]
    a_log_prob_sum = slab[:B, n_outputs:n_outputs + 1]
    # entropy is x-independent (Normal entropy, no tanh correction — matches PyTorch)
    entropy = jnp.broadcast_to(
        0.5 + _HALF_LOG_2PI + padded["logstd"][:, :n_outputs], (B, n_outputs))
    return a, a_log_prob_sum, entropy


# ----------------------------------------------------------------------------
# Pure-JAX reference (mirrors the PyTorch forward)
# ----------------------------------------------------------------------------
def _reference(x, params, eps):
    h1 = jax.nn.relu(x @ params["w1"] + params["b1"])
    h2 = jax.nn.relu(h1 @ params["w2"] + params["b2"])
    policy = h2 @ params["w3"] + params["b3"]
    log_std = params["logstd"]
    std = jnp.exp(log_std)
    u = policy + std * eps
    u_log_prob = -((u - policy) ** 2) / (2.0 * std * std) - log_std - _HALF_LOG_2PI
    a = jnp.tanh(u)
    a_log_prob = u_log_prob - jnp.log(1.0 - a * a + 0.001)
    entropy = jnp.broadcast_to(0.5 + _HALF_LOG_2PI + log_std, policy.shape)
    return a, jnp.sum(a_log_prob, axis=-1, keepdims=True), entropy


if __name__ == "__main__":
    n_inputs, n_outputs, hidden_size = 32, 8, 32
    batch = 8

    key = jax.random.PRNGKey(0)
    k_params, k_x, k_eps = jax.random.split(key, 3)

    params = init_params(k_params, n_inputs, n_outputs, hidden_size)
    padded = pad_params(params, n_inputs, n_outputs, hidden_size)
    op = padded["w3"].shape[1]

    x = jax.random.normal(k_x, (batch, n_inputs), jnp.float32)
    eps = jax.random.normal(k_eps, (batch, op), jnp.float32)  # lane-padded noise

    a, a_log_prob_sum, entropy = mujoco_actor_forward(x, padded, eps, n_outputs)
    jax.block_until_ready((a, a_log_prob_sum, entropy))

    a_ref, alogp_ref, ent_ref = _reference(x, params, eps[:, :n_outputs])
    assert jnp.allclose(a, a_ref, atol=1e-5), "action mismatch"
    assert jnp.allclose(a_log_prob_sum, alogp_ref, atol=1e-5), "log-prob mismatch"
    assert jnp.allclose(entropy, ent_ref, atol=1e-6), "entropy mismatch"

    print("KERNEL_OK")
</pallas_src>

<mosaic_0001>
module attributes {stable_mosaic.version = 11 : i64} {
  func.func @_actor_kernel(%arg0: i32, %arg1: memref<8x32xf32, #tpu.memory_space<vmem>>, %arg2: memref<32x128xf32, #tpu.memory_space<vmem>>, %arg3: memref<1x128xf32, #tpu.memory_space<vmem>>, %arg4: memref<128x128xf32, #tpu.memory_space<vmem>>, %arg5: memref<1x128xf32, #tpu.memory_space<vmem>>, %arg6: memref<128x128xf32, #tpu.memory_space<vmem>>, %arg7: memref<1x128xf32, #tpu.memory_space<vmem>>, %arg8: memref<1x128xf32, #tpu.memory_space<vmem>>, %arg9: memref<1x128xf32, #tpu.memory_space<vmem>>, %arg10: memref<1x128xf32, #tpu.memory_space<vmem>>, %arg11: memref<8x128xf32, #tpu.memory_space<vmem>>, %arg12: memref<8x128xf32, #tpu.memory_space<vmem>>) attributes {dimension_semantics = [#tpu.dimension_semantics<parallel>], iteration_bounds = array<i64: 1>, scalar_prefetch = 0 : i64, scratch_operands = 0 : i64, tpu.core_type = #tpu.core_type<tc>, window_params = [{transform_indices = @transform_0, window_bounds = array<i64: 8, 32>}, {pipeline_mode = #tpu.pipeline_mode<synchronous>, transform_indices = @transform_1, window_bounds = array<i64: 32, 128>}, {pipeline_mode = #tpu.pipeline_mode<synchronous>, transform_indices = @transform_2, window_bounds = array<i64: 1, 128>}, {pipeline_mode = #tpu.pipeline_mode<synchronous>, transform_indices = @transform_3, window_bounds = array<i64: 128, 128>}, {pipeline_mode = #tpu.pipeline_mode<synchronous>, transform_indices = @transform_4, window_bounds = array<i64: 1, 128>}, {pipeline_mode = #tpu.pipeline_mode<synchronous>, transform_indices = @transform_5, window_bounds = array<i64: 128, 128>}, {pipeline_mode = #tpu.pipeline_mode<synchronous>, transform_indices = @transform_6, window_bounds = array<i64: 1, 128>}, {pipeline_mode = #tpu.pipeline_mode<synchronous>, transform_indices = @transform_7, window_bounds = array<i64: 1, 128>}, {pipeline_mode = #tpu.pipeline_mode<synchronous>, transform_indices = @transform_8, window_bounds = array<i64: 1, 128>}, {pipeline_mode = #tpu.pipeline_mode<synchronous>, transform_indices = @transform_9, window_bounds = array<i64: 1, 128>}, {transform_indices = @transform_10, window_bounds = array<i64: 8, 128>}, {transform_indices = @transform_11, window_bounds = array<i64: 8, 128>}]} {
    %c0 = arith.constant 0 : index
    %c0_0 = arith.constant 0 : index
    %0 = vector.load %arg1[%c0, %c0_0] : memref<8x32xf32, #tpu.memory_space<vmem>>, vector<8x32xf32>
    %c0_1 = arith.constant 0 : index
    %c0_2 = arith.constant 0 : index
    %1 = vector.load %arg2[%c0_1, %c0_2] : memref<32x128xf32, #tpu.memory_space<vmem>>, vector<32x128xf32>
    %cst = arith.constant dense<0.000000e+00> : vector<8x128xf32>
    %2 = tpu.matmul %0, %1, %cst {dimension_numbers = #tpu.dot_dimension_numbers<[1], [0], [0], [1], [0, 0, 1, 1], [], []>} : vector<8x32xf32>, vector<32x128xf32>, vector<8x128xf32> -> vector<8x128xf32>
    %c0_3 = arith.constant 0 : index
    %c0_4 = arith.constant 0 : index
    %3 = vector.load %arg3[%c0_3, %c0_4] : memref<1x128xf32, #tpu.memory_space<vmem>>, vector<1x128xf32>
    %4 = vector.broadcast %3 : vector<1x128xf32> to vector<8x128xf32>
    %5 = arith.addf %2, %4 : vector<8x128xf32>
    %cst_5 = arith.constant 0.000000e+00 : f32
    %6 = vector.broadcast %cst_5 : f32 to vector<8x128xf32>
    %7 = arith.maximumf %5, %6 : vector<8x128xf32>
    %c0_6 = arith.constant 0 : index
    %c0_7 = arith.constant 0 : index
    %8 = vector.load %arg4[%c0_6, %c0_7] : memref<128x128xf32, #tpu.memory_space<vmem>>, vector<128x128xf32>
    %cst_8 = arith.constant dense<0.000000e+00> : vector<8x128xf32>
    %9 = tpu.matmul %7, %8, %cst_8 {dimension_numbers = #tpu.dot_dimension_numbers<[1], [0], [0], [1], [0, 0, 1, 1], [], []>} : vector<8x128xf32>, vector<128x128xf32>, vector<8x128xf32> -> vector<8x128xf32>
    %c0_9 = arith.constant 0 : index
    %c0_10 = arith.constant 0 : index
    %10 = vector.load %arg5[%c0_9, %c0_10] : memref<1x128xf32, #tpu.memory_space<vmem>>, vector<1x128xf32>
    %11 = vector.broadcast %10 : vector<1x128xf32> to vector<8x128xf32>
    %12 = arith.addf %9, %11 : vector<8x128xf32>
    %cst_11 = arith.constant 0.000000e+00 : f32
    %13 = vector.broadcast %cst_11 : f32 to vector<8x128xf32>
    %14 = arith.maximumf %12, %13 : vector<8x128xf32>
    %c0_12 = arith.constant 0 : index
    %c0_13 = arith.constant 0 : index
    %15 = vector.load %arg6[%c0_12, %c0_13] : memref<128x128xf32, #tpu.memory_space<vmem>>, vector<128x128xf32>
    %cst_14 = arith.constant dense<0.000000e+00> : vector<8x128xf32>
    %16 = tpu.matmul %14, %15, %cst_14 {dimension_numbers = #tpu.dot_dimension_numbers<[1], [0], [0], [1], [0, 0, 1, 1], [], []>} : vector<8x128xf32>, vector<128x128xf32>, vector<8x128xf32> -> vector<8x128xf32>
    %c0_15 = arith.constant 0 : index
    %c0_16 = arith.constant 0 : index
    %17 = vector.load %arg7[%c0_15, %c0_16] : memref<1x128xf32, #tpu.memory_space<vmem>>, vector<1x128xf32>
    %18 = vector.broadcast %17 : vector<1x128xf32> to vector<8x128xf32>
    %19 = arith.addf %16, %18 : vector<8x128xf32>
    %c0_17 = arith.constant 0 : index
    %c0_18 = arith.constant 0 : index
    %20 = vector.load %arg8[%c0_17, %c0_18] : memref<1x128xf32, #tpu.memory_space<vmem>>, vector<1x128xf32>
    %c0_19 = arith.constant 0 : index
    %c0_20 = arith.constant 0 : index
    %21 = vector.load %arg9[%c0_19, %c0_20] : memref<1x128xf32, #tpu.memory_space<vmem>>, vector<1x128xf32>
    %c0_21 = arith.constant 0 : index
    %c0_22 = arith.constant 0 : index
    %22 = vector.load %arg11[%c0_21, %c0_22] : memref<8x128xf32, #tpu.memory_space<vmem>>, vector<8x128xf32>
    %c0_23 = arith.constant 0 : index
    %c0_24 = arith.constant 0 : index
    %23 = vector.load %arg10[%c0_23, %c0_24] : memref<1x128xf32, #tpu.memory_space<vmem>>, vector<1x128xf32>
    %cst_25 = arith.constant 0.000000e+00 : f32
    %24 = vector.broadcast %cst_25 : f32 to vector<1x128xf32>
    %25 = arith.cmpf one, %23, %24 : vector<1x128xf32>
    %26 = vector.broadcast %21 : vector<1x128xf32> to vector<8x128xf32>
    %27 = arith.mulf %26, %22 : vector<8x128xf32>
    %28 = arith.addf %19, %27 : vector<8x128xf32>
    %29 = math.tanh %28 : vector<8x128xf32>
    %30 = arith.mulf %22, %22 : vector<8x128xf32>
    %cst_26 = arith.constant -5.000000e-01 : f32
    %31 = vector.broadcast %cst_26 : f32 to vector<8x128xf32>
    %32 = arith.mulf %31, %30 : vector<8x128xf32>
    %33 = vector.broadcast %20 : vector<1x128xf32> to vector<8x128xf32>
    %34 = arith.subf %32, %33 : vector<8x128xf32>
    %cst_27 = arith.constant 0.918938517 : f32
    %35 = vector.broadcast %cst_27 : f32 to vector<8x128xf32>
    %36 = arith.subf %34, %35 : vector<8x128xf32>
    %37 = arith.mulf %29, %29 : vector<8x128xf32>
    %cst_28 = arith.constant 1.000000e+00 : f32
    %38 = vector.broadcast %cst_28 : f32 to vector<8x128xf32>
    %39 = arith.subf %38, %37 : vector<8x128xf32>
    %cst_29 = arith.constant 1.000000e-03 : f32
    %40 = vector.broadcast %cst_29 : f32 to vector<8x128xf32>
    %41 = arith.addf %39, %40 : vector<8x128xf32>
    %42 = math.log %41 : vector<8x128xf32>
    %43 = arith.subf %36, %42 : vector<8x128xf32>
    %cst_30 = arith.constant 0.000000e+00 : f32
    %44 = vector.shape_cast %25 : vector<1x128xi1> to vector<1x128xi1>
    %45 = vector.broadcast %44 : vector<1x128xi1> to vector<8x128xi1>
    %46 = vector.broadcast %cst_30 : f32 to vector<8x128xf32>
    %47 = arith.select %45, %43, %46 : vector<8x128xi1>, vector<8x128xf32>
    %cst_31 = arith.constant dense<0.000000e+00> : vector<8xf32>
    %48 = vector.multi_reduction <add>, %47, %cst_31 [1] : vector<8x128xf32> to vector<8xf32>
    %49 = vector.shape_cast %48 : vector<8xf32> to vector<8x1xf32>
    %50 = vector.shape_cast %25 : vector<1x128xi1> to vector<1x128xi1>
    %51 = vector.broadcast %50 : vector<1x128xi1> to vector<8x128xi1>
    %52 = vector.shape_cast %49 : vector<8x1xf32> to vector<8x1xf32>
    %53 = vector.broadcast %52 : vector<8x1xf32> to vector<8x128xf32>
    %54 = arith.select %51, %29, %53 : vector<8x128xi1>, vector<8x128xf32>
    %c0_32 = arith.constant 0 : index
    %c0_33 = arith.constant 0 : index
    %55 = vector.load %arg12[%c0_32, %c0_33] : memref<8x128xf32, #tpu.memory_space<vmem>>, vector<8x128xf32>
    tpu.vector_store %arg12[%c0_32, %c0_33], %54 {strides = array<i32>} : memref<8x128xf32, #tpu.memory_space<vmem>>, vector<8x128xf32>,
    return
  }
  func.func @transform_0(%arg0: i32) -> (i32, i32) {
    %c0_i32 = arith.constant 0 : i32
    %c0_i32_0 = arith.constant 0 : i32
    return %arg0, %c0_i32 : i32, i32
  }
  func.func @transform_1(%arg0: i32) -> (i32, i32) {
    %c0_i32 = arith.constant 0 : i32
    %c0_i32_0 = arith.constant 0 : i32
    %c0_i32_1 = arith.constant 0 : i32
    return %c0_i32, %c0_i32_0 : i32, i32
  }
  func.func @transform_2(%arg0: i32) -> (i32, i32) {
    %c0_i32 = arith.constant 0 : i32
    %c0_i32_0 = arith.constant 0 : i32
    %c0_i32_1 = arith.constant 0 : i32
    return %c0_i32, %c0_i32_0 : i32, i32
  }
  func.func @transform_3(%arg0: i32) -> (i32, i32) {
    %c0_i32 = arith.constant 0 : i32
    %c0_i32_0 = arith.constant 0 : i32
    %c0_i32_1 = arith.constant 0 : i32
    return %c0_i32, %c0_i32_0 : i32, i32
  }
  func.func @transform_4(%arg0: i32) -> (i32, i32) {
    %c0_i32 = arith.constant 0 : i32
    %c0_i32_0 = arith.constant 0 : i32
    %c0_i32_1 = arith.constant 0 : i32
    return %c0_i32, %c0_i32_0 : i32, i32
  }
  func.func @transform_5(%arg0: i32) -> (i32, i32) {
    %c0_i32 = arith.constant 0 : i32
    %c0_i32_0 = arith.constant 0 : i32
    %c0_i32_1 = arith.constant 0 : i32
    return %c0_i32, %c0_i32_0 : i32, i32
  }
  func.func @transform_6(%arg0: i32) -> (i32, i32) {
    %c0_i32 = arith.constant 0 : i32
    %c0_i32_0 = arith.constant 0 : i32
    %c0_i32_1 = arith.constant 0 : i32
    return %c0_i32, %c0_i32_0 : i32, i32
  }
  func.func @transform_7(%arg0: i32) -> (i32, i32) {
    %c0_i32 = arith.constant 0 : i32
    %c0_i32_0 = arith.constant 0 : i32
    %c0_i32_1 = arith.constant 0 : i32
    return %c0_i32, %c0_i32_0 : i32, i32
  }
  func.func @transform_8(%arg0: i32) -> (i32, i32) {
    %c0_i32 = arith.constant 0 : i32
    %c0_i32_0 = arith.constant 0 : i32
    %c0_i32_1 = arith.constant 0 : i32
    return %c0_i32, %c0_i32_0 : i32, i32
  }
  func.func @transform_9(%arg0: i32) -> (i32, i32) {
    %c0_i32 = arith.constant 0 : i32
    %c0_i32_0 = arith.constant 0 : i32
    %c0_i32_1 = arith.constant 0 : i32
    return %c0_i32, %c0_i32_0 : i32, i32
  }
  func.func @transform_10(%arg0: i32) -> (i32, i32) {
    %c0_i32 = arith.constant 0 : i32
    %c0_i32_0 = arith.constant 0 : i32
    return %arg0, %c0_i32 : i32, i32
  }
  func.func @transform_11(%arg0: i32) -> (i32, i32) {
    %c0_i32 = arith.constant 0 : i32
    %c0_i32_0 = arith.constant 0 : i32
    return %arg0, %c0_i32 : i32, i32
  }
}

</mosaic_0001>

<llo_original>
// kernel: tpu_custom_call.1
$region0: #{tpu_custom_call.1}
  #allocation0 [shape = 'u32[]', space=smem, size = 0x4, offset = 0x4, fixed_abs, tag = 'smem constant byte address 0x4 - core index']
  #allocation1 [shape = 'u32[144,128]{1,0:T(1,128)}', space=vmem, size = 0x12000, scoped, tag = 'internal scratch']
  %s0 = inlined_call_operand.hbm [shape: f32[8,32], index: 0, kind: input, shape index: {}]
  %s1 = inlined_call_operand.hbm [shape: f32[32,128], index: 1, kind: input, shape index: {}]
  %s2 = inlined_call_operand.vmem [shape: f32[1,128], index: 2, kind: input, shape index: {}]
  %s3 = inlined_call_operand.hbm [shape: f32[128,128], index: 3, kind: input, shape index: {}]
  %s4 = inlined_call_operand.vmem [shape: f32[1,128], index: 4, kind: input, shape index: {}]
  %s5 = inlined_call_operand.hbm [shape: f32[128,128], index: 5, kind: input, shape index: {}]
  %s6 = inlined_call_operand.vmem [shape: f32[1,128], index: 6, kind: input, shape index: {}]
  %s7 = inlined_call_operand.vmem [shape: f32[1,128], index: 7, kind: input, shape index: {}]
  %s8 = inlined_call_operand.vmem [shape: f32[1,128], index: 8, kind: input, shape index: {}]
  %s9 = inlined_call_operand.vmem [shape: f32[1,128], index: 9, kind: input, shape index: {}]
  %s10 = inlined_call_operand.vmem [shape: f32[8,128], index: 10, kind: input, shape index: {}]
  %s11 = inlined_call_operand.hbm [shape: f32[8,128], index: 11, kind: output, shape index: {}]
  %s12 = sld [smem:[#allocation0]]
  $region70: #{tpu_custom_call.1} parent=0
    _
  %s14 = ssub.s32 1, %s12
  %s15 = scalar_select 0, %s14, %s12
  $region1: #{tpu_custom_call.1} parent=0
    #allocation2 [shape = 'u8[4096]{0}', space=vmem, size = 0x1000, scoped, tag = 'input window, operand 0, single buffered']
    #allocation3 [shape = 's32[1]{0}', space=sflag, size = 0x4, scoped, tag = 'scoped memory for tpu_custom_call.1']
    #allocation4 [shape = 's32[1]{0}', space=sflag, size = 0x4, scoped, tag = 'scoped memory for tpu_custom_call.1']
    #allocation5 [shape = 'u8[16384]{0}', space=vmem, size = 0x4000, scoped, tag = 'input window, operand 1, single buffered']
    #allocation6 [shape = 's32[1]{0}', space=sflag, size = 0x4, scoped, tag = 'scoped memory for tpu_custom_call.1']
    #allocation7 [shape = 'u8[65536]{0}', space=vmem, size = 0x10000, scoped, tag = 'input window, operand 3, single buffered']
    #allocation8 [shape = 'u8[65536]{0}', space=vmem, size = 0x10000, scoped, tag = 'input window, operand 5, single buffered']
    #allocation9 [shape = 's32[1]{0}', space=sflag, size = 0x4, scoped, tag = 'scoped memory for tpu_custom_call.1']
    #allocation10 [shape = 'u8[4096]{0}', space=vmem, size = 0x1000, scoped, tag = 'output window, operand 0, single buffered']
    %16 = vsyncpa [#allocation3], 0
    %17 = vsyncpa [#allocation6], 0
    %18 = vsyncpa [#allocation9], 0
    %19 = vsyncpa [#allocation4], 0
    // Predicated region
    $region2: #{tpu_custom_call.1} parent=1 // pred_check
      _
    $region3: #{tpu_custom_call.1} parent=1 // pred_check_branch
      %21 = sbr.rel (0) target = $region5
    $region4: #{tpu_custom_call.1} parent=1 // pred_region
      %s23 = ssub.s32 128, 128
      %24 = vsyncadd [#allocation3], %s23
      %s26 = sshll.u32 [#allocation2], 4
      %s27 = int_to_ptr.vmem [resolvable:$true] %s26
      %29 = dma.hbm_to_vmem [thread:$0]  %s0, 128, %s27, [#allocation3]
    $region5: #{tpu_custom_call.1} parent=1 // pred_fallthru
      _
    // Predicated region
    $region6: #{tpu_custom_call.1} parent=1 // pred_check
      _
    $region7: #{tpu_custom_call.1} parent=1 // pred_check_branch
      %31 = sbr.rel (0) target = $region9
    $region8: #{tpu_custom_call.1} parent=1 // pred_region
      %s33 = ssub.s32 512, 512
      %34 = vsyncadd [#allocation6], %s33
      %s35 = sshll.u32 [#allocation5], 4
      %s36 = int_to_ptr.vmem [resolvable:$true] %s35
      %41 = dma.hbm_to_vmem [thread:$0]  %s1, 512, %s36, [#allocation6], 128, 128, 8
    $region9: #{tpu_custom_call.1} parent=1 // pred_fallthru
      _
    // Predicated region
    $region10: #{tpu_custom_call.1} parent=1 // pred_check
      _
    $region11: #{tpu_custom_call.1} parent=1 // pred_check_branch
      %43 = sbr.rel (0) target = $region13
    $region12: #{tpu_custom_call.1} parent=1 // pred_region
      _
    $region13: #{tpu_custom_call.1} parent=1 // pred_fallthru
      _
    // Predicated region
    $region14: #{tpu_custom_call.1} parent=1 // pred_check
      _
    $region15: #{tpu_custom_call.1} parent=1 // pred_check_branch
      %45 = sbr.rel (0) target = $region17
    $region16: #{tpu_custom_call.1} parent=1 // pred_region
      %s47 = ssub.s32 2048, 2048
      %48 = vsyncadd [#allocation6], %s47
      %s49 = sshll.u32 [#allocation7], 4
      %s50 = int_to_ptr.vmem [resolvable:$true] %s49
      %55 = dma.hbm_to_vmem [thread:$0]  %s3, 2048, %s50, [#allocation6], 128, 128, 8
    $region17: #{tpu_custom_call.1} parent=1 // pred_fallthru
      _
    // Predicated region
    $region18: #{tpu_custom_call.1} parent=1 // pred_check
      _
    $region19: #{tpu_custom_call.1} parent=1 // pred_check_branch
      %57 = sbr.rel (0) target = $region21
    $region20: #{tpu_custom_call.1} parent=1 // pred_region
      _
    $region21: #{tpu_custom_call.1} parent=1 // pred_fallthru
      _
    // Predicated region
    $region22: #{tpu_custom_call.1} parent=1 // pred_check
      _
    $region23: #{tpu_custom_call.1} parent=1 // pred_check_branch
      %59 = sbr.rel (0) target = $region25
    $region24: #{tpu_custom_call.1} parent=1 // pred_region
      %s61 = ssub.s32 2048, 2048
      %62 = vsyncadd [#allocation9], %s61
      %s63 = sshll.u32 [#allocation8], 4
      %s64 = int_to_ptr.vmem [resolvable:$true] %s63
      %69 = dma.hbm_to_vmem [thread:$0]  %s5, 2048, %s64, [#allocation9], 128, 128, 8
    $region25: #{tpu_custom_call.1} parent=1 // pred_fallthru
      _
    // Predicated region
    $region26: #{tpu_custom_call.1} parent=1 // pred_check
      _
    $region27: #{tpu_custom_call.1} parent=1 // pred_check_branch
      %71 = sbr.rel (0) target = $region29
    $region28: #{tpu_custom_call.1} parent=1 // pred_region
      _
    $region29: #{tpu_custom_call.1} parent=1 // pred_fallthru
      _
    // Predicated region
    $region30: #{tpu_custom_call.1} parent=1 // pred_check
      _
    $region31: #{tpu_custom_call.1} parent=1 // pred_check_branch
      %73 = sbr.rel (0) target = $region33
    $region32: #{tpu_custom_call.1} parent=1 // pred_region
      _
    $region33: #{tpu_custom_call.1} parent=1 // pred_fallthru
      _
    // Predicated region
    $region34: #{tpu_custom_call.1} parent=1 // pred_check
      _
    $region35: #{tpu_custom_call.1} parent=1 // pred_check_branch
      %75 = sbr.rel (0) target = $region37
    $region36: #{tpu_custom_call.1} parent=1 // pred_region
      _
    $region37: #{tpu_custom_call.1} parent=1 // pred_fallthru
      _
    // Predicated region
    $region38: #{tpu_custom_call.1} parent=1 // pred_check
      _
    $region39: #{tpu_custom_call.1} parent=1 // pred_check_branch
      %77 = sbr.rel (0) target = $region41
    $region40: #{tpu_custom_call.1} parent=1 // pred_region
      _
    $region41: #{tpu_custom_call.1} parent=1 // pred_fallthru
      _
    // Predicated region
    $region42: #{tpu_custom_call.1} parent=1 // pred_check
      _
    $region43: #{tpu_custom_call.1} parent=1 // pred_check_branch
      %79 = sbr.rel (0) target = $region45
    $region44: #{tpu_custom_call.1} parent=1 // pred_region
      _
    $region45: #{tpu_custom_call.1} parent=1 // pred_fallthru
      _
    // Predicated region
    $region46: #{tpu_custom_call.1} parent=1 // pred_check
      _
    $region47: #{tpu_custom_call.1} parent=1 // pred_check_branch
      %81 = sbr.rel (0) target = $region49
    $region48: #{tpu_custom_call.1} parent=1 // pred_region
      %82 = dma.done [#allocation3], 128
    $region49: #{tpu_custom_call.1} parent=1 // pred_fallthru
      _
    // Predicated region
    $region50: #{tpu_custom_call.1} parent=1 // pred_check
      _
    $region51: #{tpu_custom_call.1} parent=1 // pred_check_branch
      %84 = sbr.rel (0) target = $region53
    $region52: #{tpu_custom_call.1} parent=1 // pred_region
      %85 = dma.done [#allocation6], 512
    $region53: #{tpu_custom_call.1} parent=1 // pred_fallthru
      _
    // Predicated region
    $region54: #{tpu_custom_call.1} parent=1 // pred_check
      _
    $region55: #{tpu_custom_call.1} parent=1 // pred_check_branch
      %87 = sbr.rel (0) target = $region57
    $region56: #{tpu_custom_call.1} parent=1 // pred_region
      %88 = dma.done [#allocation6], 2048
    $region57: #{tpu_custom_call.1} parent=1 // pred_fallthru
      _
    // Predicated region
    $region58: #{tpu_custom_call.1} parent=1 // pred_check
      _
    $region59: #{tpu_custom_call.1} parent=1 // pred_check_branch
      %90 = sbr.rel (0) target = $region61
    $region60: #{tpu_custom_call.1} parent=1 // pred_region
      %91 = dma.done [#allocation9], 2048
    $region61: #{tpu_custom_call.1} parent=1 // pred_fallthru
      _
    %v92 = vld [vmem:[#allocation2] sm:$0xff]
    %v93 = vld [vmem:[#allocation5] sm:$0xff]
    %v94 = vld [vmem:[#allocation5 + $0x8] sm:$0xff]
    %v95 = vld [vmem:[#allocation5 + $0x10] sm:$0xff]
    %v96 = vld [vmem:[#allocation5 + $0x18] sm:$0xff]
    %v97 = vld [vmem:[%s2] sm:$0x1]
    %v99 = vlaneseq
    %v100 = vshrl.u32 %v99, 7
    %v101 = vsub.s32 0, %v100
    %v102 = vrot.slane %v97, %v101
    %vm104 = vcmask 261120
    %v106 = vsel %vm104, %v92, 0
    %108 = vmatprep.subr.mxu0 0.0
    %109 = vmatpush1.msra.mxu0 %v93
    %110 = vmatprep.subr.mxu0 0.0
    %111 = vmatpush1.msra.mxu0 %v94
    %112 = vmatprep.subr.mxu0 0.0
    %113 = vmatpush1.msra.mxu0 %v95
    %114 = vmatprep.subr.mxu0 0.0
    %115 = vmatpush1.msra.mxu0 %v96
    %116 = vmatprep.subr.mxu0 0.0
    %117 = vmatpush1.msra.mxu0 0.0
    %118 = vmatprep.subr.mxu0 0.0
    %119 = vmatpush1.msra.mxu0 0.0
    %120 = vmatprep.subr.mxu0 0.0
    %121 = vmatpush1.msra.mxu0 0.0
    %122 = vmatprep.subr.mxu0 0.0
    %123 = vmatpush1.msra.mxu0 0.0
    %124 = vmatprep.subr.mxu0 0.0
    %125 = vmatpush1.msra.mxu0 0.0
    %126 = vmatprep.subr.mxu0 0.0
    %127 = vmatpush1.msra.mxu0 0.0
    %128 = vmatprep.subr.mxu0 0.0
    %129 = vmatpush1.msra.mxu0 0.0
    %130 = vmatprep.subr.mxu0 0.0
    %131 = vmatpush1.msra.mxu0 0.0
    %132 = vmatprep.subr.mxu0 0.0
    %133 = vmatpush1.msra.mxu0 0.0
    %134 = vmatprep.subr.mxu0 0.0
    %135 = vmatpush1.msra.mxu0 0.0
    %136 = vmatprep.subr.mxu0 0.0
    %137 = vmatpush1.msra.mxu0 0.0
    %138 = vmatprep.subr.mxu0 0.0
    %139 = vmatpush1.msra.mxu0 0.0
    %140 = vmatprep.subr.mxu0 0.0
    %141 = vmatpush1.msra.mxu0 0.0
    %142 = vmatprep.subr.mxu0 0.0
    %143 = vmatpush1.msra.mxu0 0.0
    %144 = vmatprep.subr.mxu0 0.0
    %145 = vmatpush1.msra.mxu0 0.0
    %146 = vmatprep.subr.mxu0 0.0
    %147 = vmatpush1.msra.mxu0 0.0
    %148 = vmatprep.subr.mxu0 0.0
    %149 = vmatpush1.msra.mxu0 0.0
    %150 = vmatprep.subr.mxu0 0.0
    %151 = vmatpush1.msra.mxu0 0.0
    %152 = vmatprep.subr.mxu0 0.0
    %153 = vmatpush1.msra.mxu0 0.0
    %154 = vmatprep.subr.mxu0 0.0
    %155 = vmatpush1.msra.mxu0 0.0
    %156 = vmatprep.subr.mxu0 0.0
    %157 = vmatpush1.msra.mxu0 0.0
    %158 = vmatprep.subr.mxu0 0.0
    %159 = vmatpush1.msra.mxu0 0.0
    %160 = vmatprep.subr.mxu0 0.0
    %161 = vmatpush1.msra.mxu0 0.0
    %162 = vmatprep.subr.mxu0 0.0
    %163 = vmatpush1.msra.mxu0 0.0
    %164 = vmatprep.subr.mxu0 0.0
    %165 = vmatpush1.msra.mxu0 0.0
    %166 = vmatprep.subr.mxu0 0.0
    %167 = vmatpush1.msra.mxu0 0.0
    %168 = vmatprep.subr.mxu0 0.0
    %169 = vmatpush1.msra.mxu0 0.0
    %170 = vmatprep.subr.mxu0 0.0
    %171 = vmatpush1.msra.mxu0 0.0
    %172 = vmatprep.mubr.f32.mxu0 0.0
    %173 = vmatmul.mubr.f32.gmra.mrb[0].mxu0 %v106
    %v174 = vpop.f32.mrb[0].mxu0
    %v175 = vadd.f32 %v102, %v174
    %v176 = vpop.f32.mrb[0].mxu0
    %177 = vdwg.mxu0
    %v178 = vmax.f32 %v175, 0.0
    %v179 = vld [vmem:[#allocation7] sm:$0xff]
    %v180 = vld [vmem:[#allocation7 + $0x8] sm:$0xff]
    %v181 = vld [vmem:[#allocation7 + $0x10] sm:$0xff]
    %v182 = vld [vmem:[#allocation7 + $0x18] sm:$0xff]
    %v183 = vld [vmem:[#allocation7 + $0x20] sm:$0xff]
    %v184 = vld [vmem:[#allocation7 + $0x28] sm:$0xff]
    %v185 = vld [vmem:[#allocation7 + $0x30] sm:$0xff]
    %v186 = vld [vmem:[#allocation7 + $0x38] sm:$0xff]
    %v187 = vld [vmem:[#allocation7 + $0x40] sm:$0xff]
    %v188 = vld [vmem:[#allocation7 + $0x48] sm:$0xff]
    %v189 = vld [vmem:[#allocation7 + $0x50] sm:$0xff]
    %v190 = vld [vmem:[#allocation7 + $0x58] sm:$0xff]
    %v191 = vld [vmem:[#allocation7 + $0x60] sm:$0xff]
    %v192 = vld [vmem:[#allocation7 + $0x68] sm:$0xff]
    %v193 = vld [vmem:[#allocation7 + $0x70] sm:$0xff]
    %v194 = vld [vmem:[#allocation7 + $0x78] sm:$0xff]
    %v195 = vld [vmem:[%s4] sm:$0x1]
    %v197 = vlaneseq
    %v198 = vshrl.u32 %v197, 7
    %v199 = vsub.s32 0, %v198
    %v200 = vrot.slane %v195, %v199
    %202 = vmatprep.subr.mxu0 0.0
    %203 = vmatpush1.msra.mxu0 %v179
    %204 = vmatprep.subr.mxu0 0.0
    %205 = vmatpush1.msra.mxu0 %v180
    %206 = vmatprep.subr.mxu0 0.0
    %207 = vmatpush1.msra.mxu0 %v181
    %208 = vmatprep.subr.mxu0 0.0
    %209 = vmatpush1.msra.mxu0 %v182
    %210 = vmatprep.subr.mxu0 0.0
    %211 = vmatpush1.msra.mxu0 %v183
    %212 = vmatprep.subr.mxu0 0.0
    %213 = vmatpush1.msra.mxu0 %v184
    %214 = vmatprep.subr.mxu0 0.0
    %215 = vmatpush1.msra.mxu0 %v185
    %216 = vmatprep.subr.mxu0 0.0
    %217 = vmatpush1.msra.mxu0 %v186
    %218 = vmatprep.subr.mxu0 0.0
    %219 = vmatpush1.msra.mxu0 %v187
    %220 = vmatprep.subr.mxu0 0.0
    %221 = vmatpush1.msra.mxu0 %v188
    %222 = vmatprep.subr.mxu0 0.0
    %223 = vmatpush1.msra.mxu0 %v189
    %224 = vmatprep.subr.mxu0 0.0
    %225 = vmatpush1.msra.mxu0 %v190
    %226 = vmatprep.subr.mxu0 0.0
    %227 = vmatpush1.msra.mxu0 %v191
    %228 = vmatprep.subr.mxu0 0.0
    %229 = vmatpush1.msra.mxu0 %v192
    %230 = vmatprep.subr.mxu0 0.0
    %231 = vmatpush1.msra.mxu0 %v193
    %232 = vmatprep.subr.mxu0 0.0
    %233 = vmatpush1.msra.mxu0 %v194
    %234 = vmatprep.subr.mxu0 0.0
    %235 = vmatpush1.msra.mxu0 0.0
    %236 = vmatprep.subr.mxu0 0.0
    %237 = vmatpush1.msra.mxu0 0.0
    %238 = vmatprep.subr.mxu0 0.0
    %239 = vmatpush1.msra.mxu0 0.0
    %240 = vmatprep.subr.mxu0 0.0
    %241 = vmatpush1.msra.mxu0 0.0
    %242 = vmatprep.subr.mxu0 0.0
    %243 = vmatpush1.msra.mxu0 0.0
    %244 = vmatprep.subr.mxu0 0.0
    %245 = vmatpush1.msra.mxu0 0.0
    %246 = vmatprep.subr.mxu0 0.0
    %247 = vmatpush1.msra.mxu0 0.0
    %248 = vmatprep.subr.mxu0 0.0
    %249 = vmatpush1.msra.mxu0 0.0
    %250 = vmatprep.subr.mxu0 0.0
    %251 = vmatpush1.msra.mxu0 0.0
    %252 = vmatprep.subr.mxu0 0.0
    %253 = vmatpush1.msra.mxu0 0.0
    %254 = vmatprep.subr.mxu0 0.0
    %255 = vmatpush1.msra.mxu0 0.0
    %256 = vmatprep.subr.mxu0 0.0
    %257 = vmatpush1.msra.mxu0 0.0
    %258 = vmatprep.subr.mxu0 0.0
    %259 = vmatpush1.msra.mxu0 0.0
    %260 = vmatprep.subr.mxu0 0.0
    %261 = vmatpush1.msra.mxu0 0.0
    %262 = vmatprep.subr.mxu0 0.0
    %263 = vmatpush1.msra.mxu0 0.0
    %264 = vmatprep.subr.mxu0 0.0
    %265 = vmatpush1.msra.mxu0 0.0
    %266 = vmatprep.mubr.f32.mxu0 0.0
    %267 = vmatmul.mubr.f32.gmra.mrb[0].mxu0 %v178
    %v268 = vpop.f32.mrb[0].mxu0
    %v269 = vadd.f32 %v200, %v268
    %v270 = vpop.f32.mrb[0].mxu0
    %271 = vdwg.mxu0
    %v272 = vmax.f32 %v269, 0.0
    %v273 = vld [vmem:[#allocation8] sm:$0xff]
    %v274 = vld [vmem:[#allocation8 + $0x8] sm:$0xff]
    %v275 = vld [vmem:[#allocation8 + $0x10] sm:$0xff]
    %v276 = vld [vmem:[#allocation8 + $0x18] sm:$0xff]
    %v277 = vld [vmem:[#allocation8 + $0x20] sm:$0xff]
    %v278 = vld [vmem:[#allocation8 + $0x28] sm:$0xff]
    %v279 = vld [vmem:[#allocation8 + $0x30] sm:$0xff]
    %v280 = vld [vmem:[#allocation8 + $0x38] sm:$0xff]
    %v281 = vld [vmem:[#allocation8 + $0x40] sm:$0xff]
    %v282 = vld [vmem:[#allocation8 + $0x48] sm:$0xff]
    %v283 = vld [vmem:[#allocation8 + $0x50] sm:$0xff]
    %v284 = vld [vmem:[#allocation8 + $0x58] sm:$0xff]
    %v285 = vld [vmem:[#allocation8 + $0x60] sm:$0xff]
    %v286 = vld [vmem:[#allocation8 + $0x68] sm:$0xff]
    %v287 = vld [vmem:[#allocation8 + $0x70] sm:$0xff]
    %v288 = vld [vmem:[#allocation8 + $0x78] sm:$0xff]
    %v289 = vld [vmem:[%s6] sm:$0x1]
    %v291 = vlaneseq
    %v292 = vshrl.u32 %v291, 7
    %v293 = vsub.s32 0, %v292
    %v294 = vrot.slane %v289, %v293
    %296 = vmatprep.subr.mxu0 0.0
    %297 = vmatpush1.msra.mxu0 %v273
    %298 = vmatprep.subr.mxu0 0.0
    %299 = vmatpush1.msra.mxu0 %v274
    %300 = vmatprep.subr.mxu0 0.0
    %301 = vmatpush1.msra.mxu0 %v275
    %302 = vmatprep.subr.mxu0 0.0
    %303 = vmatpush1.msra.mxu0 %v276
    %304 = vmatprep.subr.mxu0 0.0
    %305 = vmatpush1.msra.mxu0 %v277
    %306 = vmatprep.subr.mxu0 0.0
    %307 = vmatpush1.msra.mxu0 %v278
    %308 = vmatprep.subr.mxu0 0.0
    %309 = vmatpush1.msra.mxu0 %v279
    %310 = vmatprep.subr.mxu0 0.0
    %311 = vmatpush1.msra.mxu0 %v280
    %312 = vmatprep.subr.mxu0 0.0
    %313 = vmatpush1.msra.mxu0 %v281
    %314 = vmatprep.subr.mxu0 0.0
    %315 = vmatpush1.msra.mxu0 %v282
    %316 = vmatprep.subr.mxu0 0.0
    %317 = vmatpush1.msra.mxu0 %v283
    %318 = vmatprep.subr.mxu0 0.0
    %319 = vmatpush1.msra.mxu0 %v284
    %320 = vmatprep.subr.mxu0 0.0
    %321 = vmatpush1.msra.mxu0 %v285
    %322 = vmatprep.subr.mxu0 0.0
    %323 = vmatpush1.msra.mxu0 %v286
    %324 = vmatprep.subr.mxu0 0.0
    %325 = vmatpush1.msra.mxu0 %v287
    %326 = vmatprep.subr.mxu0 0.0
    %327 = vmatpush1.msra.mxu0 %v288
    %328 = vmatprep.subr.mxu0 0.0
    %329 = vmatpush1.msra.mxu0 0.0
    %330 = vmatprep.subr.mxu0 0.0
    %331 = vmatpush1.msra.mxu0 0.0
    %332 = vmatprep.subr.mxu0 0.0
    %333 = vmatpush1.msra.mxu0 0.0
    %334 = vmatprep.subr.mxu0 0.0
    %335 = vmatpush1.msra.mxu0 0.0
    %336 = vmatprep.subr.mxu0 0.0
    %337 = vmatpush1.msra.mxu0 0.0
    %338 = vmatprep.subr.mxu0 0.0
    %339 = vmatpush1.msra.mxu0 0.0
    %340 = vmatprep.subr.mxu0 0.0
    %341 = vmatpush1.msra.mxu0 0.0
    %342 = vmatprep.subr.mxu0 0.0
    %343 = vmatpush1.msra.mxu0 0.0
    %344 = vmatprep.subr.mxu0 0.0
    %345 = vmatpush1.msra.mxu0 0.0
    %346 = vmatprep.subr.mxu0 0.0
    %347 = vmatpush1.msra.mxu0 0.0
    %348 = vmatprep.subr.mxu0 0.0
    %349 = vmatpush1.msra.mxu0 0.0
    %350 = vmatprep.subr.mxu0 0.0
    %351 = vmatpush1.msra.mxu0 0.0
    %352 = vmatprep.subr.mxu0 0.0
    %353 = vmatpush1.msra.mxu0 0.0
    %354 = vmatprep.subr.mxu0 0.0
    %355 = vmatpush1.msra.mxu0 0.0
    %356 = vmatprep.subr.mxu0 0.0
    %357 = vmatpush1.msra.mxu0 0.0
    %358 = vmatprep.subr.mxu0 0.0
    %359 = vmatpush1.msra.mxu0 0.0
    %360 = vmatprep.mubr.f32.mxu0 0.0
    %361 = vmatmul.mubr.f32.gmra.mrb[0].mxu0 %v272
    %v362 = vpop.f32.mrb[0].mxu0
    %v363 = vadd.f32 %v294, %v362
    %v364 = vpop.f32.mrb[0].mxu0
    %365 = vdwg.mxu0
    %v366 = vld [vmem:[%s7] sm:$0x1]
    %v367 = vld [vmem:[%s8] sm:$0x1]
    %v368 = vld [vmem:[%s10] sm:$0xff]
    %v369 = vld [vmem:[%s9] sm:$0x1]
    %vm370 = vcmp.ne.f32.partialorder %v369, 0.0
    %v372 = vlaneseq
    %v373 = vshrl.u32 %v372, 7
    %v374 = vsub.s32 0, %v373
    %v375 = vrot.slane %v367, %v374
    %v377 = vmul.f32 %v375, %v368
    %v378 = vadd.f32 %v363, %v377
    %v379 = vtanh.pop %v378
    %v380 = vmul.f32 %v368, %v368
    %v381 = vmul.f32 %v380, -0.5
    %v383 = vlaneseq
    %v384 = vshrl.u32 %v383, 7
    %v385 = vsub.s32 0, %v384
    %v386 = vrot.slane %v366, %v385
    %v388 = vsub.f32 %v381, %v386
    %v389 = vsub.f32 %v388, 0.9189385
    %v390 = vmul.f32 %v379, %v379
    %v391 = vsub.f32 1.0, %v390
    %v392 = vadd.f32 %v391, 0.001
    %v393 = vlog2.pop %v392
    %v394 = vmul.f32 %v393, 0.6931472
    %v395 = vsub.f32 %v389, %v394
    %v396 = vsel %vm370, 1, 0
    %v397 = vlaneseq
    %v398 = vshrl.u32 %v397, 7
    %v399 = vsub.s32 0, %v398
    %v400 = vrot.slane %v396, %v399
    %vm401 = vcmp.eq.s32.totalorder %v400, 1
    %v402 = vsel %vm401, %v395, 0.0
    %403 = vadd.xlane.f32.xlu0 %v402
    %v404 = vpop.xlane.xlu0 %403
    %v405 = vsel %vm401, %v379, %v404
    %406 = vst [vmem:[#allocation10] sm:$0xff] %v405
    // Predicated region
    $region62: #{tpu_custom_call.1} parent=1 // pred_check
      _
    $region63: #{tpu_custom_call.1} parent=1 // pred_check_branch
      %408 = sbr.rel (0) target = $region65
    $region64: #{tpu_custom_call.1} parent=1 // pred_region
      %s410 = ssub.s32 128, 128
      %411 = vsyncadd [#allocation4], %s410
      %s413 = sshll.u32 [#allocation10], 4
      %s414 = int_to_ptr.vmem [resolvable:$true] %s413
      %416 = dma.vmem_to_hbm [thread:$0]  %s414, 128, %s11, [#allocation4]
    $region65: #{tpu_custom_call.1} parent=1 // pred_fallthru
      _
    // Predicated region
    $region66: #{tpu_custom_call.1} parent=1 // pred_check
      _
    $region67: #{tpu_custom_call.1} parent=1 // pred_check_branch
      %418 = sbr.rel (0) target = $region69
    $region68: #{tpu_custom_call.1} parent=1 // pred_region
      %419 = dma.done [#allocation4], 128
    $region69: #{tpu_custom_call.1} parent=1 // pred_fallthru
      _
    %420 = vsyncpa [#allocation3], 1
    %421 = vsyncpa [#allocation6], 1
    %422 = vsyncpa [#allocation9], 1
    %423 = vsyncpa [#allocation4], 1

</llo_original>
